<compile_context>
chip_gen: v5e
topology: v5e:2x2
jax: 0.10.0
libtpu: 0.0.40
codegen_flags: <defaults>
</compile_context>

<pallas_src>
import functools

import jax
import jax.numpy as jnp
from jax.experimental import pallas as pl
from jax.experimental.pallas import tpu as pltpu

LEAKY_SLOPE = 0.2
BN_EPS = 1e-5
LANE = 128
SUBLANE = 8


def _round_up(n, m):
    return ((n + m - 1) // m) * m


def _pad2(a, rows, cols):
    pr = rows - a.shape[0]
    pc = cols - a.shape[1]
    if pr or pc:
        a = jnp.pad(a, ((0, pr), (0, pc)))
    return a


def _encoder_kernel(num_hidden, *refs):
    """Fused Encoder forward on one batch tile.

    refs layout:
      refs[0]                         : x tile           (TILE_M, d0_pad)
      then, per hidden layer (2 refs) : W_folded (in_pad, out_pad), b_folded (1, out_pad)
      then final Linear               : W (in_pad, emb_pad), b (1, emb_pad)
      refs[-1]                        : output tile      (TILE_M, emb_pad)
    """
    x_ref = refs[0]
    out_ref = refs[-1]

    h = x_ref[...].astype(jnp.float32)
    idx = 1
    for _ in range(num_hidden):
        w_ref, b_ref = refs[idx], refs[idx + 1]
        idx += 2
        # Linear with BN folded in, then LeakyReLU(0.2).  Dropout: identity (eval mode).
        h = jnp.dot(h, w_ref[...], preferred_element_type=jnp.float32) + b_ref[...]
        h = jnp.where(h > 0, h, LEAKY_SLOPE * h)

    w_ref, b_ref = refs[idx], refs[idx + 1]
    y = jnp.dot(h, w_ref[...], preferred_element_type=jnp.float32) + b_ref[...]
    out_ref[...] = y.astype(out_ref.dtype)


def encoder_forward(x, hidden_params, final_w, final_b, *, tile_m=512):
    """hidden_params: list of (W(in,out), b(1,out), gamma, beta, running_mean, running_var)."""
    n, d_in = x.shape
    emb = final_w.shape[1]
    num_hidden = len(hidden_params)

    # ---- fold BatchNorm (eval) into the preceding Linear -----------------------------------
    layers = []
    for (w, b, g, be, rm, rv) in hidden_params:
        scale = g * jax.lax.rsqrt(rv + BN_EPS)                  # (1, out)
        layers.append((w * scale, (b - rm) * scale + be))       # (in, out), (1, out)
    layers.append((final_w, final_b))

    # ---- zero-pad every feature axis to a multiple of 128 (lane-dense) ---------------------
    d_in_p = _round_up(d_in, LANE)
    padded = []
    prev = d_in_p
    for (w, b) in layers:
        out_p = _round_up(w.shape[1], LANE)
        padded.append((_pad2(w.astype(jnp.float32), prev, out_p),
                       _pad2(b.astype(jnp.float32), 1, out_p)))
        prev = out_p
    emb_p = prev

    # ---- batch tiling -----------------------------------------------------------------------
    tile_m = min(tile_m, _round_up(n, SUBLANE))
    n_p = _round_up(n, tile_m)
    x_p = _pad2(x.astype(jnp.float32), n_p, d_in_p)

    flat_inputs = [x_p]
    for (w, b) in padded:
        flat_inputs.extend((w, b))

    in_specs = [pl.BlockSpec((tile_m, d_in_p), lambda i: (i, 0))]
    for (w, b) in padded:
        in_specs.append(pl.BlockSpec(w.shape, lambda i: (0, 0)))   # resident across grid steps
        in_specs.append(pl.BlockSpec(b.shape, lambda i: (0, 0)))
    out_specs = pl.BlockSpec((tile_m, emb_p), lambda i: (i, 0))

    flops = 2 * n_p * sum(int(w.shape[0]) * int(w.shape[1]) for (w, _) in padded)
    bytes_accessed = sum(int(a.size) * 4 for a in flat_inputs) + n_p * emb_p * 4

    kernel = functools.partial(_encoder_kernel, num_hidden)
    out_padded = pl.pallas_call(
        kernel,
        out_shape=jax.ShapeDtypeStruct((n_p, emb_p), jnp.float32),
        grid=(n_p // tile_m,),
        in_specs=in_specs,
        out_specs=out_specs,
        compiler_params=pltpu.CompilerParams(
            dimension_semantics=("parallel",),
            vmem_limit_bytes=48 * 1024 * 1024,
        ),
        cost_estimate=pl.CostEstimate(
            flops=flops, transcendentals=0, bytes_accessed=bytes_accessed),
    )(*flat_inputs)

    return out_padded[:n, :emb].astype(x.dtype)


def init_encoder_params(key, data_dim, compress_dims, embedding_dim):
    """Deterministic synthetic init matching the PyTorch module's parameter shapes."""
    hidden_params = []
    dim = data_dim
    for item in compress_dims:
        key, kw, kb, kg, kbe = jax.random.split(key, 5)
        w = jax.random.normal(kw, (dim, item), jnp.float32) * 0.1   # (in, out) = Linear(dim,item).weight.T
        b = jax.random.normal(kb, (1, item), jnp.float32) * 0.1
        gamma = 1.0 + 0.1 * jax.random.normal(kg, (1, item), jnp.float32)
        beta = 0.1 * jax.random.normal(kbe, (1, item), jnp.float32)
        running_mean = jnp.zeros((1, item), jnp.float32)   # fresh BatchNorm1d running stats
        running_var = jnp.ones((1, item), jnp.float32)
        hidden_params.append((w, b, gamma, beta, running_mean, running_var))
        dim = item
    key, kw, kb = jax.random.split(key, 3)
    final_w = jax.random.normal(kw, (dim, embedding_dim), jnp.float32) * 0.1
    final_b = jax.random.normal(kb, (1, embedding_dim), jnp.float32) * 0.1
    return hidden_params, final_w, final_b


def encoder_reference(x, hidden_params, final_w, final_b):
    """Pure-JAX reference (unfolded BN) for correctness checking."""
    h = x.astype(jnp.float32)
    for (w, b, g, be, rm, rv) in hidden_params:
        h = h @ w + b
        h = (h - rm) * jax.lax.rsqrt(rv + BN_EPS) * g + be
        h = jnp.where(h > 0, h, LEAKY_SLOPE * h)
    return h @ final_w + final_b


if __name__ == "__main__":
    # Small shapes consistent with Encoder(data_dim, compress_dims, embedding_dim, drop)
    batch = 16
    data_dim = 32
    compress_dims = (64, 32)
    embedding_dim = 16

    key = jax.random.PRNGKey(0)
    key, kx = jax.random.split(key)
    x = jax.random.normal(kx, (batch, data_dim), jnp.float32)

    hidden_params, final_w, final_b = init_encoder_params(
        key, data_dim, compress_dims, embedding_dim)

    out = encoder_forward(x, hidden_params, final_w, final_b)
    out = jax.block_until_ready(out)

    ref = encoder_reference(x, hidden_params, final_w, final_b)
    assert out.shape == (batch, embedding_dim), out.shape
    assert jnp.allclose(out, ref, atol=1e-5, rtol=1e-5), float(jnp.max(jnp.abs(out - ref)))

    print("KERNEL_OK")
</pallas_src>

<mosaic_0001>
module attributes {stable_mosaic.version = 11 : i64} {
  func.func @_encoder_kernel(%arg0: i32, %arg1: memref<16x128xf32, #tpu.memory_space<vmem>>, %arg2: memref<128x128xf32, #tpu.memory_space<vmem>>, %arg3: memref<1x128xf32, #tpu.memory_space<vmem>>, %arg4: memref<128x128xf32, #tpu.memory_space<vmem>>, %arg5: memref<1x128xf32, #tpu.memory_space<vmem>>, %arg6: memref<128x128xf32, #tpu.memory_space<vmem>>, %arg7: memref<1x128xf32, #tpu.memory_space<vmem>>, %arg8: memref<16x128xf32, #tpu.memory_space<vmem>>) attributes {dimension_semantics = [#tpu.dimension_semantics<parallel>], iteration_bounds = array<i64: 1>, scalar_prefetch = 0 : i64, scratch_operands = 0 : i64, tpu.core_type = #tpu.core_type<tc>, window_params = [{transform_indices = @transform_0, window_bounds = array<i64: 16, 128>}, {pipeline_mode = #tpu.pipeline_mode<synchronous>, transform_indices = @transform_1, window_bounds = array<i64: 128, 128>}, {pipeline_mode = #tpu.pipeline_mode<synchronous>, transform_indices = @transform_2, window_bounds = array<i64: 1, 128>}, {pipeline_mode = #tpu.pipeline_mode<synchronous>, transform_indices = @transform_3, window_bounds = array<i64: 128, 128>}, {pipeline_mode = #tpu.pipeline_mode<synchronous>, transform_indices = @transform_4, window_bounds = array<i64: 1, 128>}, {pipeline_mode = #tpu.pipeline_mode<synchronous>, transform_indices = @transform_5, window_bounds = array<i64: 128, 128>}, {pipeline_mode = #tpu.pipeline_mode<synchronous>, transform_indices = @transform_6, window_bounds = array<i64: 1, 128>}, {transform_indices = @transform_7, window_bounds = array<i64: 16, 128>}]} {
    %c0 = arith.constant 0 : index
    %c0_0 = arith.constant 0 : index
    %0 = vector.load %arg1[%c0, %c0_0] : memref<16x128xf32, #tpu.memory_space<vmem>>, vector<16x128xf32>
    %c0_1 = arith.constant 0 : index
    %c0_2 = arith.constant 0 : index
    %1 = vector.load %arg2[%c0_1, %c0_2] : memref<128x128xf32, #tpu.memory_space<vmem>>, vector<128x128xf32>
    %cst = arith.constant dense<0.000000e+00> : vector<16x128xf32>
    %2 = tpu.matmul %0, %1, %cst {dimension_numbers = #tpu.dot_dimension_numbers<[1], [0], [0], [1], [0, 0, 1, 1], [], []>} : vector<16x128xf32>, vector<128x128xf32>, vector<16x128xf32> -> vector<16x128xf32>
    %c0_3 = arith.constant 0 : index
    %c0_4 = arith.constant 0 : index
    %3 = vector.load %arg3[%c0_3, %c0_4] : memref<1x128xf32, #tpu.memory_space<vmem>>, vector<1x128xf32>
    %4 = vector.broadcast %3 : vector<1x128xf32> to vector<16x128xf32>
    %5 = arith.addf %2, %4 : vector<16x128xf32>
    %cst_5 = arith.constant 0.000000e+00 : f32
    %6 = vector.broadcast %cst_5 : f32 to vector<16x128xf32>
    %7 = arith.cmpf ogt, %5, %6 : vector<16x128xf32>
    %cst_6 = arith.constant 2.000000e-01 : f32
    %8 = vector.broadcast %cst_6 : f32 to vector<16x128xf32>
    %9 = arith.mulf %8, %5 : vector<16x128xf32>
    %10 = arith.select %7, %5, %9 : vector<16x128xi1>, vector<16x128xf32>
    %c0_7 = arith.constant 0 : index
    %c0_8 = arith.constant 0 : index
    %11 = vector.load %arg4[%c0_7, %c0_8] : memref<128x128xf32, #tpu.memory_space<vmem>>, vector<128x128xf32>
    %cst_9 = arith.constant dense<0.000000e+00> : vector<16x128xf32>
    %12 = tpu.matmul %10, %11, %cst_9 {dimension_numbers = #tpu.dot_dimension_numbers<[1], [0], [0], [1], [0, 0, 1, 1], [], []>} : vector<16x128xf32>, vector<128x128xf32>, vector<16x128xf32> -> vector<16x128xf32>
    %c0_10 = arith.constant 0 : index
    %c0_11 = arith.constant 0 : index
    %13 = vector.load %arg5[%c0_10, %c0_11] : memref<1x128xf32, #tpu.memory_space<vmem>>, vector<1x128xf32>
    %14 = vector.broadcast %13 : vector<1x128xf32> to vector<16x128xf32>
    %15 = arith.addf %12, %14 : vector<16x128xf32>
    %cst_12 = arith.constant 0.000000e+00 : f32
    %16 = vector.broadcast %cst_12 : f32 to vector<16x128xf32>
    %17 = arith.cmpf ogt, %15, %16 : vector<16x128xf32>
    %cst_13 = arith.constant 2.000000e-01 : f32
    %18 = vector.broadcast %cst_13 : f32 to vector<16x128xf32>
    %19 = arith.mulf %18, %15 : vector<16x128xf32>
    %20 = arith.select %17, %15, %19 : vector<16x128xi1>, vector<16x128xf32>
    %c0_14 = arith.constant 0 : index
    %c0_15 = arith.constant 0 : index
    %21 = vector.load %arg6[%c0_14, %c0_15] : memref<128x128xf32, #tpu.memory_space<vmem>>, vector<128x128xf32>
    %cst_16 = arith.constant dense<0.000000e+00> : vector<16x128xf32>
    %22 = tpu.matmul %20, %21, %cst_16 {dimension_numbers = #tpu.dot_dimension_numbers<[1], [0], [0], [1], [0, 0, 1, 1], [], []>} : vector<16x128xf32>, vector<128x128xf32>, vector<16x128xf32> -> vector<16x128xf32>
    %c0_17 = arith.constant 0 : index
    %c0_18 = arith.constant 0 : index
    %23 = vector.load %arg7[%c0_17, %c0_18] : memref<1x128xf32, #tpu.memory_space<vmem>>, vector<1x128xf32>
    %24 = vector.broadcast %23 : vector<1x128xf32> to vector<16x128xf32>
    %25 = arith.addf %22, %24 : vector<16x128xf32>
    %c0_19 = arith.constant 0 : index
    %c0_20 = arith.constant 0 : index
    %26 = vector.load %arg8[%c0_19, %c0_20] : memref<16x128xf32, #tpu.memory_space<vmem>>, vector<16x128xf32>
    tpu.vector_store %arg8[%c0_19, %c0_20], %25 {strides = array<i32>} : memref<16x128xf32, #tpu.memory_space<vmem>>, vector<16x128xf32>,
    return
  }
  func.func @transform_0(%arg0: i32) -> (i32, i32) {
    %c0_i32 = arith.constant 0 : i32
    %c0_i32_0 = arith.constant 0 : i32
    return %arg0, %c0_i32 : i32, i32
  }
  func.func @transform_1(%arg0: i32) -> (i32, i32) {
    %c0_i32 = arith.constant 0 : i32
    %c0_i32_0 = arith.constant 0 : i32
    %c0_i32_1 = arith.constant 0 : i32
    return %c0_i32, %c0_i32_0 : i32, i32
  }
  func.func @transform_2(%arg0: i32) -> (i32, i32) {
    %c0_i32 = arith.constant 0 : i32
    %c0_i32_0 = arith.constant 0 : i32
    %c0_i32_1 = arith.constant 0 : i32
    return %c0_i32, %c0_i32_0 : i32, i32
  }
  func.func @transform_3(%arg0: i32) -> (i32, i32) {
    %c0_i32 = arith.constant 0 : i32
    %c0_i32_0 = arith.constant 0 : i32
    %c0_i32_1 = arith.constant 0 : i32
    return %c0_i32, %c0_i32_0 : i32, i32
  }
  func.func @transform_4(%arg0: i32) -> (i32, i32) {
    %c0_i32 = arith.constant 0 : i32
    %c0_i32_0 = arith.constant 0 : i32
    %c0_i32_1 = arith.constant 0 : i32
    return %c0_i32, %c0_i32_0 : i32, i32
  }
  func.func @transform_5(%arg0: i32) -> (i32, i32) {
    %c0_i32 = arith.constant 0 : i32
    %c0_i32_0 = arith.constant 0 : i32
    %c0_i32_1 = arith.constant 0 : i32
    return %c0_i32, %c0_i32_0 : i32, i32
  }
  func.func @transform_6(%arg0: i32) -> (i32, i32) {
    %c0_i32 = arith.constant 0 : i32
    %c0_i32_0 = arith.constant 0 : i32
    %c0_i32_1 = arith.constant 0 : i32
    return %c0_i32, %c0_i32_0 : i32, i32
  }
  func.func @transform_7(%arg0: i32) -> (i32, i32) {
    %c0_i32 = arith.constant 0 : i32
    %c0_i32_0 = arith.constant 0 : i32
    return %arg0, %c0_i32 : i32, i32
  }
}

</mosaic_0001>

<llo_original>
// kernel: tpu_custom_call.1
$region0: #{tpu_custom_call.1}
  #allocation0 [shape = 'u32[]', space=smem, size = 0x4, offset = 0x4, fixed_abs, tag = 'smem constant byte address 0x4 - core index']
  #allocation1 [shape = 'u32[72,128]{1,0:T(1,128)}', space=vmem, size = 0x9000, scoped, tag = 'internal scratch']
  %s0 = inlined_call_operand.hbm [shape: f32[16,128], index: 0, kind: input, shape index: {}]
  %s1 = inlined_call_operand.hbm [shape: f32[128,128], index: 1, kind: input, shape index: {}]
  %s2 = inlined_call_operand.vmem [shape: f32[1,128], index: 2, kind: input, shape index: {}]
  %s3 = inlined_call_operand.hbm [shape: f32[128,128], index: 3, kind: input, shape index: {}]
  %s4 = inlined_call_operand.vmem [shape: f32[1,128], index: 4, kind: input, shape index: {}]
  %s5 = inlined_call_operand.hbm [shape: f32[128,128], index: 5, kind: input, shape index: {}]
  %s6 = inlined_call_operand.vmem [shape: f32[1,128], index: 6, kind: input, shape index: {}]
  %s7 = inlined_call_operand.hbm [shape: f32[16,128], index: 7, kind: output, shape index: {}]
  %s8 = sld [smem:[#allocation0]]
  $region54: #{tpu_custom_call.1} parent=0
    _
  %s10 = ssub.s32 1, %s8
  %s11 = scalar_select 0, %s10, %s8
  $region1: #{tpu_custom_call.1} parent=0
    #allocation2 [shape = 'u8[8192]{0}', space=vmem, size = 0x2000, scoped, tag = 'input window, operand 0, single buffered']
    #allocation3 [shape = 's32[1]{0}', space=sflag, size = 0x4, scoped, tag = 'scoped memory for tpu_custom_call.1']
    #allocation4 [shape = 's32[1]{0}', space=sflag, size = 0x4, scoped, tag = 'scoped memory for tpu_custom_call.1']
    #allocation5 [shape = 'u8[65536]{0}', space=vmem, size = 0x10000, scoped, tag = 'input window, operand 1, single buffered']
    #allocation6 [shape = 's32[1]{0}', space=sflag, size = 0x4, scoped, tag = 'scoped memory for tpu_custom_call.1']
    #allocation7 [shape = 'u8[65536]{0}', space=vmem, size = 0x10000, scoped, tag = 'input window, operand 3, single buffered']
    #allocation8 [shape = 'u8[65536]{0}', space=vmem, size = 0x10000, scoped, tag = 'input window, operand 5, single buffered']
    #allocation9 [shape = 's32[1]{0}', space=sflag, size = 0x4, scoped, tag = 'scoped memory for tpu_custom_call.1']
    #allocation10 [shape = 'u8[8192]{0}', space=vmem, size = 0x2000, scoped, tag = 'output window, operand 0, single buffered']
    %12 = vsyncpa [#allocation3], 0
    %13 = vsyncpa [#allocation6], 0
    %14 = vsyncpa [#allocation9], 0
    %15 = vsyncpa [#allocation4], 0
    // Predicated region
    $region2: #{tpu_custom_call.1} parent=1 // pred_check
      _
    $region3: #{tpu_custom_call.1} parent=1 // pred_check_branch
      %17 = sbr.rel (0) target = $region5
    $region4: #{tpu_custom_call.1} parent=1 // pred_region
      %19 = vsyncadd [#allocation3], 0
      %s20 = sshll.u32 %s0, 4
      %s21 = int_to_ptr.hbm [resolvable:$true] %s20
      %s22 = sshll.u32 [#allocation2], 4
      %s23 = int_to_ptr.vmem [resolvable:$true] %s22
      %28 = dma.hbm_to_vmem [thread:$0]  %s21, 256, %s23, [#allocation3], 128, 128, 8
    $region5: #{tpu_custom_call.1} parent=1 // pred_fallthru
      _
    // Predicated region
    $region6: #{tpu_custom_call.1} parent=1 // pred_check
      _
    $region7: #{tpu_custom_call.1} parent=1 // pred_check_branch
      %30 = sbr.rel (0) target = $region9
    $region8: #{tpu_custom_call.1} parent=1 // pred_region
      %32 = vsyncadd [#allocation6], 0
      %s33 = sshll.u32 %s1, 4
      %s34 = int_to_ptr.hbm [resolvable:$true] %s33
      %s35 = sshll.u32 [#allocation5], 4
      %s36 = int_to_ptr.vmem [resolvable:$true] %s35
      %41 = dma.hbm_to_vmem [thread:$0]  %s34, 2048, %s36, [#allocation6], 128, 128, 8
    $region9: #{tpu_custom_call.1} parent=1 // pred_fallthru
      _
    // Predicated region
    $region10: #{tpu_custom_call.1} parent=1 // pred_check
      _
    $region11: #{tpu_custom_call.1} parent=1 // pred_check_branch
      %43 = sbr.rel (0) target = $region13
    $region12: #{tpu_custom_call.1} parent=1 // pred_region
      _
    $region13: #{tpu_custom_call.1} parent=1 // pred_fallthru
      _
    // Predicated region
    $region14: #{tpu_custom_call.1} parent=1 // pred_check
      _
    $region15: #{tpu_custom_call.1} parent=1 // pred_check_branch
      %45 = sbr.rel (0) target = $region17
    $region16: #{tpu_custom_call.1} parent=1 // pred_region
      %47 = vsyncadd [#allocation6], 0
      %s48 = sshll.u32 %s3, 4
      %s49 = int_to_ptr.hbm [resolvable:$true] %s48
      %s50 = sshll.u32 [#allocation7], 4
      %s51 = int_to_ptr.vmem [resolvable:$true] %s50
      %56 = dma.hbm_to_vmem [thread:$0]  %s49, 2048, %s51, [#allocation6], 128, 128, 8
    $region17: #{tpu_custom_call.1} parent=1 // pred_fallthru
      _
    // Predicated region
    $region18: #{tpu_custom_call.1} parent=1 // pred_check
      _
    $region19: #{tpu_custom_call.1} parent=1 // pred_check_branch
      %58 = sbr.rel (0) target = $region21
    $region20: #{tpu_custom_call.1} parent=1 // pred_region
      _
    $region21: #{tpu_custom_call.1} parent=1 // pred_fallthru
      _
    // Predicated region
    $region22: #{tpu_custom_call.1} parent=1 // pred_check
      _
    $region23: #{tpu_custom_call.1} parent=1 // pred_check_branch
      %60 = sbr.rel (0) target = $region25
    $region24: #{tpu_custom_call.1} parent=1 // pred_region
      %62 = vsyncadd [#allocation9], 0
      %s63 = sshll.u32 %s5, 4
      %s64 = int_to_ptr.hbm [resolvable:$true] %s63
      %s65 = sshll.u32 [#allocation8], 4
      %s66 = int_to_ptr.vmem [resolvable:$true] %s65
      %71 = dma.hbm_to_vmem [thread:$0]  %s64, 2048, %s66, [#allocation9], 128, 128, 8
    $region25: #{tpu_custom_call.1} parent=1 // pred_fallthru
      _
    // Predicated region
    $region26: #{tpu_custom_call.1} parent=1 // pred_check
      _
    $region27: #{tpu_custom_call.1} parent=1 // pred_check_branch
      %73 = sbr.rel (0) target = $region29
    $region28: #{tpu_custom_call.1} parent=1 // pred_region
      _
    $region29: #{tpu_custom_call.1} parent=1 // pred_fallthru
      _
    // Predicated region
    $region30: #{tpu_custom_call.1} parent=1 // pred_check
      _
    $region31: #{tpu_custom_call.1} parent=1 // pred_check_branch
      %75 = sbr.rel (0) target = $region33
    $region32: #{tpu_custom_call.1} parent=1 // pred_region
      %77 = dma.done [#allocation3], 256
    $region33: #{tpu_custom_call.1} parent=1 // pred_fallthru
      _
    // Predicated region
    $region34: #{tpu_custom_call.1} parent=1 // pred_check
      _
    $region35: #{tpu_custom_call.1} parent=1 // pred_check_branch
      %79 = sbr.rel (0) target = $region37
    $region36: #{tpu_custom_call.1} parent=1 // pred_region
      %81 = dma.done [#allocation6], 2048
    $region37: #{tpu_custom_call.1} parent=1 // pred_fallthru
      _
    // Predicated region
    $region38: #{tpu_custom_call.1} parent=1 // pred_check
      _
    $region39: #{tpu_custom_call.1} parent=1 // pred_check_branch
      %83 = sbr.rel (0) target = $region41
    $region40: #{tpu_custom_call.1} parent=1 // pred_region
      %85 = dma.done [#allocation6], 2048
    $region41: #{tpu_custom_call.1} parent=1 // pred_fallthru
      _
    // Predicated region
    $region42: #{tpu_custom_call.1} parent=1 // pred_check
      _
    $region43: #{tpu_custom_call.1} parent=1 // pred_check_branch
      %87 = sbr.rel (0) target = $region45
    $region44: #{tpu_custom_call.1} parent=1 // pred_region
      %89 = dma.done [#allocation9], 2048
    $region45: #{tpu_custom_call.1} parent=1 // pred_fallthru
      _
    %v90 = vld [vmem:[#allocation2] sm:$0xff]
    %v91 = vld [vmem:[#allocation2 + $0x8] sm:$0xff]
    %v92 = vld [vmem:[#allocation5] sm:$0xff]
    %v93 = vld [vmem:[#allocation5 + $0x8] sm:$0xff]
    %v94 = vld [vmem:[#allocation5 + $0x10] sm:$0xff]
    %v95 = vld [vmem:[#allocation5 + $0x18] sm:$0xff]
    %v96 = vld [vmem:[#allocation5 + $0x20] sm:$0xff]
    %v97 = vld [vmem:[#allocation5 + $0x28] sm:$0xff]
    %v98 = vld [vmem:[#allocation5 + $0x30] sm:$0xff]
    %v99 = vld [vmem:[#allocation5 + $0x38] sm:$0xff]
    %v100 = vld [vmem:[#allocation5 + $0x40] sm:$0xff]
    %v101 = vld [vmem:[#allocation5 + $0x48] sm:$0xff]
    %v102 = vld [vmem:[#allocation5 + $0x50] sm:$0xff]
    %v103 = vld [vmem:[#allocation5 + $0x58] sm:$0xff]
    %v104 = vld [vmem:[#allocation5 + $0x60] sm:$0xff]
    %v105 = vld [vmem:[#allocation5 + $0x68] sm:$0xff]
    %v106 = vld [vmem:[#allocation5 + $0x70] sm:$0xff]
    %v107 = vld [vmem:[#allocation5 + $0x78] sm:$0xff]
    %v108 = vld [vmem:[%s2] sm:$0x1]
    %v110 = vperm.slane %v108, 0
    %112 = vmatpush.msra.mxu0 %v107
    %113 = vmatpush.msra.mxu0 %v106
    %114 = vmatpush.msra.mxu0 %v105
    %115 = vmatpush.msra.mxu0 %v104
    %116 = vmatpush.msra.mxu0 %v103
    %117 = vmatpush.msra.mxu0 %v102
    %118 = vmatpush.msra.mxu0 %v101
    %119 = vmatpush.msra.mxu0 %v100
    %120 = vmatpush.msra.mxu0 %v99
    %121 = vmatpush.msra.mxu0 %v98
    %122 = vmatpush.msra.mxu0 %v97
    %123 = vmatpush.msra.mxu0 %v96
    %124 = vmatpush.msra.mxu0 %v95
    %125 = vmatpush.msra.mxu0 %v94
    %126 = vmatpush.msra.mxu0 %v93
    %127 = vmatpush.msra.mxu0 %v92
    %128 = vmatmul.f32.gmra.mxu0 %v90
    %v129 = vpop.f32.mrf.mxu0
    %v130 = vadd.f32 %v110, %v129
    %131 = vmatmul.f32.gmra.mxu0 %v91
    %v132 = vpop.f32.mrf.mxu0
    %v133 = vadd.f32 %v110, %v132
    %134 = vdwg.mxu0
    %vm135 = vcmp.gt.f32.partialorder %v130, 0.0
    %vm136 = vcmp.gt.f32.partialorder %v133, 0.0
    %v137 = vmul.f32 %v130, 0.2
    %v138 = vmul.f32 %v133, 0.2
    %v139 = vsel %vm135, %v130, %v137
    %v140 = vsel %vm136, %v133, %v138
    %v141 = vld [vmem:[#allocation7] sm:$0xff]
    %v142 = vld [vmem:[#allocation7 + $0x8] sm:$0xff]
    %v143 = vld [vmem:[#allocation7 + $0x10] sm:$0xff]
    %v144 = vld [vmem:[#allocation7 + $0x18] sm:$0xff]
    %v145 = vld [vmem:[#allocation7 + $0x20] sm:$0xff]
    %v146 = vld [vmem:[#allocation7 + $0x28] sm:$0xff]
    %v147 = vld [vmem:[#allocation7 + $0x30] sm:$0xff]
    %v148 = vld [vmem:[#allocation7 + $0x38] sm:$0xff]
    %v149 = vld [vmem:[#allocation7 + $0x40] sm:$0xff]
    %v150 = vld [vmem:[#allocation7 + $0x48] sm:$0xff]
    %v151 = vld [vmem:[#allocation7 + $0x50] sm:$0xff]
    %v152 = vld [vmem:[#allocation7 + $0x58] sm:$0xff]
    %v153 = vld [vmem:[#allocation7 + $0x60] sm:$0xff]
    %v154 = vld [vmem:[#allocation7 + $0x68] sm:$0xff]
    %v155 = vld [vmem:[#allocation7 + $0x70] sm:$0xff]
    %v156 = vld [vmem:[#allocation7 + $0x78] sm:$0xff]
    %v157 = vld [vmem:[%s4] sm:$0x1]
    %v159 = vperm.slane %v157, 0
    %161 = vmatpush.msra.mxu0 %v156
    %162 = vmatpush.msra.mxu0 %v155
    %163 = vmatpush.msra.mxu0 %v154
    %164 = vmatpush.msra.mxu0 %v153
    %165 = vmatpush.msra.mxu0 %v152
    %166 = vmatpush.msra.mxu0 %v151
    %167 = vmatpush.msra.mxu0 %v150
    %168 = vmatpush.msra.mxu0 %v149
    %169 = vmatpush.msra.mxu0 %v148
    %170 = vmatpush.msra.mxu0 %v147
    %171 = vmatpush.msra.mxu0 %v146
    %172 = vmatpush.msra.mxu0 %v145
    %173 = vmatpush.msra.mxu0 %v144
    %174 = vmatpush.msra.mxu0 %v143
    %175 = vmatpush.msra.mxu0 %v142
    %176 = vmatpush.msra.mxu0 %v141
    %177 = vmatmul.f32.gmra.mxu0 %v139
    %v178 = vpop.f32.mrf.mxu0
    %v179 = vadd.f32 %v159, %v178
    %180 = vmatmul.f32.gmra.mxu0 %v140
    %v181 = vpop.f32.mrf.mxu0
    %v182 = vadd.f32 %v159, %v181
    %183 = vdwg.mxu0
    %vm184 = vcmp.gt.f32.partialorder %v179, 0.0
    %vm185 = vcmp.gt.f32.partialorder %v182, 0.0
    %v186 = vmul.f32 %v179, 0.2
    %v187 = vmul.f32 %v182, 0.2
    %v188 = vsel %vm184, %v179, %v186
    %v189 = vsel %vm185, %v182, %v187
    %v190 = vld [vmem:[#allocation8] sm:$0xff]
    %v191 = vld [vmem:[#allocation8 + $0x8] sm:$0xff]
    %v192 = vld [vmem:[#allocation8 + $0x10] sm:$0xff]
    %v193 = vld [vmem:[#allocation8 + $0x18] sm:$0xff]
    %v194 = vld [vmem:[#allocation8 + $0x20] sm:$0xff]
    %v195 = vld [vmem:[#allocation8 + $0x28] sm:$0xff]
    %v196 = vld [vmem:[#allocation8 + $0x30] sm:$0xff]
    %v197 = vld [vmem:[#allocation8 + $0x38] sm:$0xff]
    %v198 = vld [vmem:[#allocation8 + $0x40] sm:$0xff]
    %v199 = vld [vmem:[#allocation8 + $0x48] sm:$0xff]
    %v200 = vld [vmem:[#allocation8 + $0x50] sm:$0xff]
    %v201 = vld [vmem:[#allocation8 + $0x58] sm:$0xff]
    %v202 = vld [vmem:[#allocation8 + $0x60] sm:$0xff]
    %v203 = vld [vmem:[#allocation8 + $0x68] sm:$0xff]
    %v204 = vld [vmem:[#allocation8 + $0x70] sm:$0xff]
    %v205 = vld [vmem:[#allocation8 + $0x78] sm:$0xff]
    %v206 = vld [vmem:[%s6] sm:$0x1]
    %v208 = vperm.slane %v206, 0
    %210 = vmatpush.msra.mxu0 %v205
    %211 = vmatpush.msra.mxu0 %v204
    %212 = vmatpush.msra.mxu0 %v203
    %213 = vmatpush.msra.mxu0 %v202
    %214 = vmatpush.msra.mxu0 %v201
    %215 = vmatpush.msra.mxu0 %v200
    %216 = vmatpush.msra.mxu0 %v199
    %217 = vmatpush.msra.mxu0 %v198
    %218 = vmatpush.msra.mxu0 %v197
    %219 = vmatpush.msra.mxu0 %v196
    %220 = vmatpush.msra.mxu0 %v195
    %221 = vmatpush.msra.mxu0 %v194
    %222 = vmatpush.msra.mxu0 %v193
    %223 = vmatpush.msra.mxu0 %v192
    %224 = vmatpush.msra.mxu0 %v191
    %225 = vmatpush.msra.mxu0 %v190
    %226 = vmatmul.f32.gmra.mxu0 %v188
    %v227 = vpop.f32.mrf.mxu0
    %v228 = vadd.f32 %v208, %v227
    %229 = vmatmul.f32.gmra.mxu0 %v189
    %v230 = vpop.f32.mrf.mxu0
    %v231 = vadd.f32 %v208, %v230
    %232 = vdwg.mxu0
    %233 = vst [vmem:[#allocation10] sm:$0xff] %v228
    %234 = vst [vmem:[#allocation10 + $0x8] sm:$0xff] %v231
    // Predicated region
    $region46: #{tpu_custom_call.1} parent=1 // pred_check
      _
    $region47: #{tpu_custom_call.1} parent=1 // pred_check_branch
      %236 = sbr.rel (0) target = $region49
    $region48: #{tpu_custom_call.1} parent=1 // pred_region
      %238 = vsyncadd [#allocation4], 0
      %s239 = sshll.u32 [#allocation10], 4
      %s240 = int_to_ptr.vmem [resolvable:$true] %s239
      %s241 = sshll.u32 %s7, 4
      %s242 = int_to_ptr.hbm [resolvable:$true] %s241
      %247 = dma.vmem_to_hbm [thread:$0]  %s240, 256, %s242, [#allocation4], 128, 128, 8
    $region49: #{tpu_custom_call.1} parent=1 // pred_fallthru
      _
    // Predicated region
    $region50: #{tpu_custom_call.1} parent=1 // pred_check
      _
    $region51: #{tpu_custom_call.1} parent=1 // pred_check_branch
      %249 = sbr.rel (0) target = $region53
    $region52: #{tpu_custom_call.1} parent=1 // pred_region
      %251 = dma.done [#allocation4], 256
    $region53: #{tpu_custom_call.1} parent=1 // pred_fallthru
      _
    %252 = vsyncpa [#allocation3], 1
    %253 = vsyncpa [#allocation6], 1
    %254 = vsyncpa [#allocation9], 1
    %255 = vsyncpa [#allocation4], 1

</llo_original>
